<compile_context>
chip_gen: v7x
topology: tpu7x:2x2x1
jax: 0.10.0
libtpu: 0.0.40
codegen_flags: <defaults>
</compile_context>

<pallas_src>
import jax
import jax.numpy as jnp
from jax.experimental import pallas as pl
from jax.experimental.pallas import tpu as pltpu


def _attn_block_kernel(x_ref, wqkv_ref, bqkv_ref, wfc_ref, bfc_ref, o_ref,
                       q_ref, k_ref, v_ref):
    # x_ref: (Bblk, N, Cp) bf16 block (channels zero-padded to Cp, lane-dense).
    # o_ref: (Bblk, Tq, Cp) bf16 query-tile output.
    # q_ref/k_ref/v_ref: (Bblk, N, Cp) bf16 VMEM scratch, filled at qi == 0.
    Bblk, N, Cp = x_ref.shape
    Tq = o_ref.shape[1]
    qi = pl.program_id(1)

    @pl.when(qi == 0)
    def _():
        # Fused Q/K/V projection (1x1 convs): one lane-dense bf16 MXU matmul
        # on the flattened (Bblk*N, Cp) slab, f32 accumulation, cast to bf16
        # immediately after the bias add (halves the biggest projection temp).
        x2d = x_ref[...].reshape(Bblk * N, Cp)
        qkv = jnp.dot(x2d, wqkv_ref[...], preferred_element_type=jnp.float32)
        qkv = (qkv + bqkv_ref[...]).astype(jnp.bfloat16)       # (Bblk*N, 3*Cp)
        q_ref[...] = qkv[:, 0 * Cp:1 * Cp].reshape(Bblk, N, Cp)
        k_ref[...] = qkv[:, 1 * Cp:2 * Cp].reshape(Bblk, N, Cp)
        v_ref[...] = qkv[:, 2 * Cp:3 * Cp].reshape(Bblk, N, Cp)

    q0 = pl.multiple_of(qi * Tq, Tq)
    q = q_ref[:, pl.ds(q0, Tq), :]                 # (Bblk, Tq, Cp) bf16
    k = k_ref[...]                                 # (Bblk, N, Cp) bf16
    v = v_ref[...]                                 # (Bblk, N, Cp) bf16

    # scores[b, i, j] = sum_c q[b,i,c] * k[b,j,c] -- bf16 operands, f32 acc.
    scores = jnp.einsum('bqc,bkc->bqk', q, k,
                        preferred_element_type=jnp.float32)    # (Bblk, Tq, N)
    scores = scores - jnp.max(scores, axis=-1, keepdims=True)
    p = jnp.exp(scores)
    denom = jnp.sum(p, axis=-1, keepdims=True)                 # (Bblk, Tq, 1)

    # Deferred softmax normalization: scale the (Tq, Cp) PV result instead of
    # the (Tq, N) probability tensor; reciprocal rides the EUP slot.
    pv = jnp.einsum('bqk,bkc->bqc', p.astype(jnp.bfloat16), v,
                    preferred_element_type=jnp.float32)        # (Bblk, Tq, Cp)
    attn_out = pv * pl.reciprocal(denom, approx=True)

    # fc (1x1 conv) + residual; lane-dense bf16 store.
    out2d = jnp.dot(attn_out.reshape(Bblk * Tq, Cp).astype(jnp.bfloat16),
                    wfc_ref[...], preferred_element_type=jnp.float32)
    out2d = out2d + bfc_ref[...]
    x_q = x_ref[:, pl.ds(q0, Tq), :].astype(jnp.float32)       # residual slab
    out = out2d.reshape(Bblk, Tq, Cp) + x_q
    o_ref[...] = out.astype(o_ref.dtype)


def _vmem_capacity_bytes():
    try:
        return int(pltpu.get_tpu_info().vmem_capacity_bytes)
    except Exception:
        return 64 << 20          # v7x has the smallest VMEM -> safe fallback


def _vmem_estimate(bblk, n, cp, tq):
    # Rough per-step VMEM footprint (bytes) used to pick Bblk.
    x_in = 2 * bblk * n * cp * 2           # double-buffered bf16 input block
    out = 2 * bblk * tq * cp * 2           # double-buffered bf16 output tile
    qkv = 3 * bblk * n * cp * 2            # q/k/v bf16 scratch
    attn = 2 * bblk * tq * n * 4           # scores + exp() f32 tile
    tmp = 3 * bblk * tq * cp * 4           # pv / fc / residual f32 temps
    w = 2 * (4 * cp * cp * 2) + 2 * (4 * cp * 4)   # weights + biases (2-buf)
    return x_in + out + qkv + attn + tmp + w


def transformer_layer(x_ncl, wq, bq, wk, bk, wv, bv, wfc, bfc, *, max_block_b=8):
    """x_ncl: (B, C_in, N) float32, PyTorch NCL layout. Returns (B, C_out, N)."""
    B, C_in, N = x_ncl.shape
    C_out = wq.shape[0]
    assert C_in == C_out, "residual add requires dim_in == dim_out"
    assert N % 16 == 0, "sequence length must be a multiple of 16 (bf16 packing)"

    Cp = max(128, ((C_in + 127) // 128) * 128)   # lane-dense padded channel dim

    # Query-tile size: whole sequence when small; >=128 MXU-friendly tiles when
    # large so the (Tq, N) score slab stays bounded.
    if N <= 512:
        Tq = N
    elif N % 256 == 0:
        Tq = 256
    elif N % 128 == 0:
        Tq = 128
    else:
        Tq = N   # TODO(synk): pad/mask ragged N instead of one giant tile
    nq = N // Tq

    # Batch block from a VMEM budget; keep >= 2 batch grid steps so both v7x
    # TensorCores get work on the "parallel" axis.
    vmem_cap = _vmem_capacity_bytes()
    vmem_budget = (2 * vmem_cap) // 5
    Bblk = 1
    for d in range(min(B, max_block_b), 0, -1):
        if B % d != 0:
            continue
        if B >= 2 and (B // d) < 2:
            continue
        if _vmem_estimate(d, N, Cp, Tq) <= vmem_budget:
            Bblk = d
            break
    est = _vmem_estimate(Bblk, N, Cp, Tq)
    vmem_limit = int(min(vmem_cap * 3 // 4, max(2 * est, 32 << 20)))

    # (B, N, C) layout, zero-pad channels to Cp, bf16 for the MXU.
    x_nlc = jnp.transpose(x_ncl, (0, 2, 1))
    x_pad = jnp.pad(x_nlc, ((0, 0), (0, 0), (0, Cp - C_in))).astype(jnp.bfloat16)

    def pad_wT(w):                 # (C_out, C_in) -> W^T zero-padded to (Cp, Cp)
        return jnp.pad(w.T, ((0, Cp - C_in), (0, Cp - C_out)))

    def pad_b(b):
        return jnp.pad(b, (0, Cp - C_out))

    # Fused, pre-transposed QKV weights/biases (padded lanes stay exactly zero).
    w_qkv = jnp.concatenate([pad_wT(wq), pad_wT(wk), pad_wT(wv)],
                            axis=1).astype(jnp.bfloat16)            # (Cp, 3*Cp)
    b_qkv = jnp.concatenate([pad_b(bq), pad_b(bk), pad_b(bv)]
                            ).reshape(1, 3 * Cp).astype(jnp.float32)
    w_fc = pad_wT(wfc).astype(jnp.bfloat16)                         # (Cp, Cp)
    b_fc = pad_b(bfc).reshape(1, Cp).astype(jnp.float32)

    out_pad = pl.pallas_call(
        _attn_block_kernel,
        out_shape=jax.ShapeDtypeStruct((B, N, Cp), jnp.bfloat16),
        grid_spec=pltpu.PrefetchScalarGridSpec(
            num_scalar_prefetch=0,
            grid=(B // Bblk, nq),
            in_specs=[
                pl.BlockSpec((Bblk, N, Cp), lambda b, q: (b, 0, 0)),  # x (resident over q)
                pl.BlockSpec((Cp, 3 * Cp), lambda b, q: (0, 0)),      # fused W_qkv^T
                pl.BlockSpec((1, 3 * Cp), lambda b, q: (0, 0)),       # fused bias
                pl.BlockSpec((Cp, Cp), lambda b, q: (0, 0)),          # W_fc^T
                pl.BlockSpec((1, Cp), lambda b, q: (0, 0)),           # fc bias
            ],
            out_specs=pl.BlockSpec((Bblk, Tq, Cp), lambda b, q: (b, q, 0)),
            scratch_shapes=[pltpu.VMEM((Bblk, N, Cp), jnp.bfloat16)] * 3,
        ),
        compiler_params=pltpu.CompilerParams(
            dimension_semantics=("parallel", "arbitrary"),
            vmem_limit_bytes=vmem_limit),
    )(x_pad, w_qkv, b_qkv, w_fc, b_fc)

    out = out_pad[:, :, :C_out].astype(x_ncl.dtype)   # strip channel padding
    return jnp.transpose(out, (0, 2, 1))              # back to (B, C, N)


def _reference(x_ncl, wq, bq, wk, bk, wv, bv, wfc, bfc):
    # Pure-JAX f32 reference following the PyTorch forward exactly.
    def conv1x1(x, w, b):  # x: (B, C_in, N), w: (C_out, C_in)
        return jnp.einsum('oc,bcn->bon', w, x) + b[None, :, None]
    q = conv1x1(x_ncl, wq, bq)
    k = conv1x1(x_ncl, wk, bk)
    v = conv1x1(x_ncl, wv, bv)
    scores = jnp.einsum('bci,bcj->bij', q, k)            # q^T k
    attn = jax.nn.softmax(scores, axis=-1)
    attn_out = jnp.einsum('bcj,bij->bci', v, attn)       # v @ attn^T
    out = conv1x1(attn_out, wfc, bfc)
    return out + x_ncl


if __name__ == "__main__":
    key = jax.random.PRNGKey(0)
    B, C, N = 2, 32, 16          # dim_in = dim_out = 32, seq length 16

    ks = jax.random.split(key, 9)
    x = jax.random.normal(ks[0], (B, C, N), dtype=jnp.float32)
    wq = jax.random.normal(ks[1], (C, C), dtype=jnp.float32) * 0.1
    bq = jax.random.normal(ks[2], (C,), dtype=jnp.float32) * 0.1
    wk = jax.random.normal(ks[3], (C, C), dtype=jnp.float32) * 0.1
    bk = jax.random.normal(ks[4], (C,), dtype=jnp.float32) * 0.1
    wv = jax.random.normal(ks[5], (C, C), dtype=jnp.float32) * 0.1
    bv = jax.random.normal(ks[6], (C,), dtype=jnp.float32) * 0.1
    wfc = jax.random.normal(ks[7], (C, C), dtype=jnp.float32) * 0.1
    bfc = jax.random.normal(ks[8], (C,), dtype=jnp.float32) * 0.1

    out = transformer_layer(x, wq, bq, wk, bk, wv, bv, wfc, bfc)
    out = jax.block_until_ready(out)

    ref = _reference(x, wq, bq, wk, bk, wv, bv, wfc, bfc)
    assert out.shape == (B, C, N)
    # bf16 MXU operands (incl. QK^T), bf16 output store and approx reciprocal
    # -> tolerance loosened accordingly (all within the review's error budget).
    assert jnp.allclose(out, ref, atol=4e-2, rtol=4e-2)

    print("KERNEL_OK")
</pallas_src>

<mosaic_0001>
module attributes {stable_mosaic.version = 11 : i64} {
  func.func @_attn_block_kernel(%arg0: i32, %arg1: i32, %arg2: memref<1x16x128xbf16, #tpu.memory_space<vmem>>, %arg3: memref<128x384xbf16, #tpu.memory_space<vmem>>, %arg4: memref<1x384xf32, #tpu.memory_space<vmem>>, %arg5: memref<128x128xbf16, #tpu.memory_space<vmem>>, %arg6: memref<1x128xf32, #tpu.memory_space<vmem>>, %arg7: memref<1x16x128xbf16, #tpu.memory_space<vmem>>, %arg8: memref<1x16x128xbf16, #tpu.memory_space<vmem>>, %arg9: memref<1x16x128xbf16, #tpu.memory_space<vmem>>, %arg10: memref<1x16x128xbf16, #tpu.memory_space<vmem>>) attributes {dimension_semantics = [#tpu.dimension_semantics<parallel>, #tpu.dimension_semantics<arbitrary>], iteration_bounds = array<i64: 2, 1>, scalar_prefetch = 0 : i64, scratch_operands = 3 : i64, tpu.core_type = #tpu.core_type<tc>, window_params = [{transform_indices = @transform_0, window_bounds = array<i64: 1, 16, 128>}, {pipeline_mode = #tpu.pipeline_mode<synchronous>, transform_indices = @transform_1, window_bounds = array<i64: 128, 384>}, {pipeline_mode = #tpu.pipeline_mode<synchronous>, transform_indices = @transform_2, window_bounds = array<i64: 1, 384>}, {pipeline_mode = #tpu.pipeline_mode<synchronous>, transform_indices = @transform_3, window_bounds = array<i64: 128, 128>}, {pipeline_mode = #tpu.pipeline_mode<synchronous>, transform_indices = @transform_4, window_bounds = array<i64: 1, 128>}, {transform_indices = @transform_5, window_bounds = array<i64: 1, 16, 128>}]} {
    %c0_i32 = arith.constant 0 : i32
    %0 = arith.cmpi eq, %arg1, %c0_i32 : i32
    %1 = arith.extui %0 : i1 to i32
    %c0_i32_0 = arith.constant 0 : i32
    %2 = arith.cmpi ne, %1, %c0_i32_0 : i32
    scf.if %2 {
      %c0_21 = arith.constant 0 : index
      %c0_22 = arith.constant 0 : index
      %c0_23 = arith.constant 0 : index
      %36 = vector.load %arg2[%c0_21, %c0_22, %c0_23] : memref<1x16x128xbf16, #tpu.memory_space<vmem>>, vector<1x16x128xbf16>
      %37 = vector.shape_cast %36 : vector<1x16x128xbf16> to vector<16x128xbf16>
      %c0_24 = arith.constant 0 : index
      %c0_25 = arith.constant 0 : index
      %38 = vector.load %arg3[%c0_24, %c0_25] : memref<128x384xbf16, #tpu.memory_space<vmem>>, vector<128x384xbf16>
      %cst_26 = arith.constant dense<0.000000e+00> : vector<16x384xf32>
      %39 = tpu.matmul %37, %38, %cst_26 {dimension_numbers = #tpu.dot_dimension_numbers<[1], [0], [0], [1], [0, 0, 1, 1], [], []>} : vector<16x128xbf16>, vector<128x384xbf16>, vector<16x384xf32> -> vector<16x384xf32>
      %c0_27 = arith.constant 0 : index
      %c0_28 = arith.constant 0 : index
      %40 = vector.load %arg4[%c0_27, %c0_28] : memref<1x384xf32, #tpu.memory_space<vmem>>, vector<1x384xf32>
      %41 = vector.broadcast %40 : vector<1x384xf32> to vector<16x384xf32>
      %42 = arith.addf %39, %41 : vector<16x384xf32>
      %43 = arith.truncf %42 : vector<16x384xf32> to vector<16x384xbf16>
      %44 = vector.extract_strided_slice %43 {offsets = [0, 0], sizes = [16, 128], strides = [1, 1]} : vector<16x384xbf16> to vector<16x128xbf16>
      %45 = vector.shape_cast %44 : vector<16x128xbf16> to vector<1x16x128xbf16>
      %c0_29 = arith.constant 0 : index
      %c0_30 = arith.constant 0 : index
      %c0_31 = arith.constant 0 : index
      %46 = vector.load %arg8[%c0_29, %c0_30, %c0_31] : memref<1x16x128xbf16, #tpu.memory_space<vmem>>, vector<1x16x128xbf16>
      tpu.vector_store %arg8[%c0_29, %c0_30, %c0_31], %45 {strides = array<i32>} : memref<1x16x128xbf16, #tpu.memory_space<vmem>>, vector<1x16x128xbf16>,
      %47 = vector.extract_strided_slice %43 {offsets = [0, 128], sizes = [16, 128], strides = [1, 1]} : vector<16x384xbf16> to vector<16x128xbf16>
      %48 = vector.shape_cast %47 : vector<16x128xbf16> to vector<1x16x128xbf16>
      %c0_32 = arith.constant 0 : index
      %c0_33 = arith.constant 0 : index
      %c0_34 = arith.constant 0 : index
      %49 = vector.load %arg9[%c0_32, %c0_33, %c0_34] : memref<1x16x128xbf16, #tpu.memory_space<vmem>>, vector<1x16x128xbf16>
      tpu.vector_store %arg9[%c0_32, %c0_33, %c0_34], %48 {strides = array<i32>} : memref<1x16x128xbf16, #tpu.memory_space<vmem>>, vector<1x16x128xbf16>,
      %50 = vector.extract_strided_slice %43 {offsets = [0, 256], sizes = [16, 128], strides = [1, 1]} : vector<16x384xbf16> to vector<16x128xbf16>
      %51 = vector.shape_cast %50 : vector<16x128xbf16> to vector<1x16x128xbf16>
      %c0_35 = arith.constant 0 : index
      %c0_36 = arith.constant 0 : index
      %c0_37 = arith.constant 0 : index
      %52 = vector.load %arg10[%c0_35, %c0_36, %c0_37] : memref<1x16x128xbf16, #tpu.memory_space<vmem>>, vector<1x16x128xbf16>
      tpu.vector_store %arg10[%c0_35, %c0_36, %c0_37], %51 {strides = array<i32>} : memref<1x16x128xbf16, #tpu.memory_space<vmem>>, vector<1x16x128xbf16>,
    } else {
    }
    %c16_i32 = arith.constant 16 : i32
    %3 = arith.muli %arg1, %c16_i32 : i32
    %4 = tpu.assume_multiple %3, 16 : i32
    %c0 = arith.constant 0 : index
    %5 = arith.index_cast %4 : i32 to index
    %c0_1 = arith.constant 0 : index
    %6 = vector.load %arg8[%c0, %5, %c0_1] : memref<1x16x128xbf16, #tpu.memory_space<vmem>>, vector<1x16x128xbf16>
    %c0_2 = arith.constant 0 : index
    %c0_3 = arith.constant 0 : index
    %c0_4 = arith.constant 0 : index
    %7 = vector.load %arg9[%c0_2, %c0_3, %c0_4] : memref<1x16x128xbf16, #tpu.memory_space<vmem>>, vector<1x16x128xbf16>
    %c0_5 = arith.constant 0 : index
    %c0_6 = arith.constant 0 : index
    %c0_7 = arith.constant 0 : index
    %8 = vector.load %arg10[%c0_5, %c0_6, %c0_7] : memref<1x16x128xbf16, #tpu.memory_space<vmem>>, vector<1x16x128xbf16>
    "tpu.trace_start"() <{level = 10 : i32, message = "bqc,bkc->bqk"}> : () -> ()
    %cst = arith.constant dense<0.000000e+00> : vector<1x16x16xf32>
    %9 = tpu.matmul %6, %7, %cst {dimension_numbers = #tpu.dot_dimension_numbers<[2], [2], [1], [1], [0, 0, 0, 1, 1, 1], [0], [0]>} : vector<1x16x128xbf16>, vector<1x16x128xbf16>, vector<1x16x16xf32> -> vector<1x16x16xf32>
    "tpu.trace_stop"() : () -> ()
    %cst_8 = arith.constant dense<0xFF800000> : vector<1x16xf32>
    %10 = vector.multi_reduction <maximumf>, %9, %cst_8 [2] : vector<1x16x16xf32> to vector<1x16xf32>
    %11 = vector.shape_cast %10 : vector<1x16xf32> to vector<1x16x1xf32>
    %12 = vector.broadcast %11 : vector<1x16x1xf32> to vector<1x16x16xf32>
    %13 = arith.subf %9, %12 : vector<1x16x16xf32>
    %14 = math.exp %13 : vector<1x16x16xf32>
    %cst_9 = arith.constant dense<0.000000e+00> : vector<1x16xf32>
    %15 = vector.multi_reduction <add>, %14, %cst_9 [2] : vector<1x16x16xf32> to vector<1x16xf32>
    %16 = vector.shape_cast %15 : vector<1x16xf32> to vector<1x16x1xf32>
    %17 = arith.truncf %14 : vector<1x16x16xf32> to vector<1x16x16xbf16>
    "tpu.trace_start"() <{level = 10 : i32, message = "bqk,bkc->bqc"}> : () -> ()
    %cst_10 = arith.constant dense<0.000000e+00> : vector<1x16x128xf32>
    %18 = tpu.matmul %17, %8, %cst_10 {dimension_numbers = #tpu.dot_dimension_numbers<[2], [1], [1], [2], [0, 0, 0, 1, 1, 2], [0], [0]>} : vector<1x16x16xbf16>, vector<1x16x128xbf16>, vector<1x16x128xf32> -> vector<1x16x128xf32>
    "tpu.trace_stop"() : () -> ()
    %19 = tpu.reciprocal %16 {approx = true} : vector<1x16x1xf32> -> vector<1x16x1xf32>
    %20 = vector.broadcast %19 : vector<1x16x1xf32> to vector<1x16x128xf32>
    %21 = arith.mulf %18, %20 : vector<1x16x128xf32>
    %22 = vector.shape_cast %21 : vector<1x16x128xf32> to vector<16x128xf32>
    %23 = arith.truncf %22 : vector<16x128xf32> to vector<16x128xbf16>
    %c0_11 = arith.constant 0 : index
    %c0_12 = arith.constant 0 : index
    %24 = vector.load %arg5[%c0_11, %c0_12] : memref<128x128xbf16, #tpu.memory_space<vmem>>, vector<128x128xbf16>
    %cst_13 = arith.constant dense<0.000000e+00> : vector<16x128xf32>
    %25 = tpu.matmul %23, %24, %cst_13 {dimension_numbers = #tpu.dot_dimension_numbers<[1], [0], [0], [1], [0, 0, 1, 1], [], []>} : vector<16x128xbf16>, vector<128x128xbf16>, vector<16x128xf32> -> vector<16x128xf32>
    %c0_14 = arith.constant 0 : index
    %c0_15 = arith.constant 0 : index
    %26 = vector.load %arg6[%c0_14, %c0_15] : memref<1x128xf32, #tpu.memory_space<vmem>>, vector<1x128xf32>
    %27 = vector.broadcast %26 : vector<1x128xf32> to vector<16x128xf32>
    %28 = arith.addf %25, %27 : vector<16x128xf32>
    %c0_16 = arith.constant 0 : index
    %29 = arith.index_cast %4 : i32 to index
    %c0_17 = arith.constant 0 : index
    %30 = vector.load %arg2[%c0_16, %29, %c0_17] : memref<1x16x128xbf16, #tpu.memory_space<vmem>>, vector<1x16x128xbf16>
    %31 = arith.extf %30 : vector<1x16x128xbf16> to vector<1x16x128xf32>
    %32 = vector.shape_cast %28 : vector<16x128xf32> to vector<1x16x128xf32>
    %33 = arith.addf %32, %31 : vector<1x16x128xf32>
    %34 = arith.truncf %33 : vector<1x16x128xf32> to vector<1x16x128xbf16>
    %c0_18 = arith.constant 0 : index
    %c0_19 = arith.constant 0 : index
    %c0_20 = arith.constant 0 : index
    %35 = vector.load %arg7[%c0_18, %c0_19, %c0_20] : memref<1x16x128xbf16, #tpu.memory_space<vmem>>, vector<1x16x128xbf16>
    tpu.vector_store %arg7[%c0_18, %c0_19, %c0_20], %34 {strides = array<i32>} : memref<1x16x128xbf16, #tpu.memory_space<vmem>>, vector<1x16x128xbf16>,
    return
  }
  func.func @transform_0(%arg0: i32, %arg1: i32) -> (i32, i32, i32) {
    %c0_i32 = arith.constant 0 : i32
    %c0_i32_0 = arith.constant 0 : i32
    %c0_i32_1 = arith.constant 0 : i32
    return %arg0, %c0_i32, %c0_i32_0 : i32, i32, i32
  }
  func.func @transform_1(%arg0: i32, %arg1: i32) -> (i32, i32) {
    %c0_i32 = arith.constant 0 : i32
    %c0_i32_0 = arith.constant 0 : i32
    %c0_i32_1 = arith.constant 0 : i32
    return %c0_i32, %c0_i32_0 : i32, i32
  }
  func.func @transform_2(%arg0: i32, %arg1: i32) -> (i32, i32) {
    %c0_i32 = arith.constant 0 : i32
    %c0_i32_0 = arith.constant 0 : i32
    %c0_i32_1 = arith.constant 0 : i32
    return %c0_i32, %c0_i32_0 : i32, i32
  }
  func.func @transform_3(%arg0: i32, %arg1: i32) -> (i32, i32) {
    %c0_i32 = arith.constant 0 : i32
    %c0_i32_0 = arith.constant 0 : i32
    %c0_i32_1 = arith.constant 0 : i32
    return %c0_i32, %c0_i32_0 : i32, i32
  }
  func.func @transform_4(%arg0: i32, %arg1: i32) -> (i32, i32) {
    %c0_i32 = arith.constant 0 : i32
    %c0_i32_0 = arith.constant 0 : i32
    %c0_i32_1 = arith.constant 0 : i32
    return %c0_i32, %c0_i32_0 : i32, i32
  }
  func.func @transform_5(%arg0: i32, %arg1: i32) -> (i32, i32, i32) {
    %c0_i32 = arith.constant 0 : i32
    %c0_i32_0 = arith.constant 0 : i32
    return %arg0, %arg1, %c0_i32 : i32, i32, i32
  }
}

</mosaic_0001>

<llo_original>
// kernel: tpu_custom_call.1
$region0: #{tpu_custom_call.1}
  #allocation0 [shape = 'u32[]', space=smem, size = 0x4, offset = 0x4, fixed_abs, tag = 'smem constant byte address 0x4 - core index']
  #allocation1 [shape = 'u32[144,128]{1,0:T(1,128)}', space=vmem, size = 0x12000, scoped, tag = 'internal scratch']
  #allocation2 [shape = 'bf16[1,16,128]{2,1,0:T(16,128)(2,1)}', space=vmem, size = 0x1000, scoped, tag = 'scratch operand']
  #allocation3 [shape = 'bf16[1,16,128]{2,1,0:T(16,128)(2,1)}', space=vmem, size = 0x1000, scoped, tag = 'scratch operand']
  #allocation4 [shape = 'bf16[1,16,128]{2,1,0:T(16,128)(2,1)}', space=vmem, size = 0x1000, scoped, tag = 'scratch operand']
  %s0 = inlined_call_operand.hbm [shape: bf16[2,16,128], index: 0, kind: input, shape index: {}]
  %s1 = inlined_call_operand.hbm [shape: bf16[128,384], index: 1, kind: input, shape index: {}]
  %s2 = inlined_call_operand.vmem [shape: f32[1,384], index: 2, kind: input, shape index: {}]
  %s3 = inlined_call_operand.hbm [shape: bf16[128,128], index: 3, kind: input, shape index: {}]
  %s4 = inlined_call_operand.vmem [shape: f32[1,128], index: 4, kind: input, shape index: {}]
  %s5 = inlined_call_operand.hbm [shape: bf16[2,16,128], index: 5, kind: output, shape index: {}]
  %s6 = sld [smem:[#allocation0]]
  $region69: #{tpu_custom_call.1} parent=0
    _
  %s8 = ssub.s32 1, %s6
  %s9 = scalar_select 0, %s8, %s6
  $region1: #{tpu_custom_call.1} parent=0
    #allocation5 [shape = 'u8[8192]{0}', space=vmem, size = 0x2000, scoped, tag = 'input window, operand 0']
    #allocation6 [shape = 's32[2]{0}', space=sflag, size = 0x8, scoped, tag = 'scoped memory for tpu_custom_call.1']
    #allocation7 [shape = 's32[2]{0}', space=sflag, size = 0x8, scoped, tag = 'scoped memory for tpu_custom_call.1']
    #allocation8 [shape = 'u8[98304]{0}', space=vmem, size = 0x18000, scoped, tag = 'input window, operand 1, single buffered']
    #allocation9 [shape = 's32[1]{0}', space=sflag, size = 0x4, scoped, tag = 'scoped memory for tpu_custom_call.1']
    #allocation10 [shape = 'u8[32768]{0}', space=vmem, size = 0x8000, scoped, tag = 'input window, operand 3, single buffered']
    #allocation11 [shape = 'u8[8192]{0}', space=vmem, size = 0x2000, scoped, tag = 'output window, operand 0']
    %10 = vsyncpa [#allocation6], 0
    %s11 = scalar_lea.sflag [#allocation6], 1
    %12 = vsyncpa %s11, 0
    %13 = vsyncpa [#allocation9], 0
    %14 = vsyncpa [#allocation7], 0
    %s15 = scalar_lea.sflag [#allocation7], 1
    %16 = vsyncpa %s15, 0
    loop: start=0, step=1, limit=4
    $region2: #{tpu_custom_call.1} parent=1 // loop_pre_header
      _
    $region3: #{tpu_custom_call.1} parent=1 // loop_header
      %s18 = sphi 0, %s22
      %p19 = scmp.ge.s32.totalorder %s18, 4
      %s25 = sphi 0, %s37
      %s26 = sphi 0, %s33
      %s27 = sphi 0, %s25
      %s28 = sphi 0, %s26
      %s29 = sphi 0, %s27
      %s30 = sphi 0, %s28
      %s40 = sphi 0, %s42
      %s43 = sphi 0, %s40
      %s44 = sphi 0, %s43
      %s60 = sphi 0, %s44
      %s64 = sphi 0, %s64
      %s66 = sphi 0, %s64
      %s67 = sphi 0, %s66
      %s81 = sphi 0, %s67
      %s85 = sphi 0, %s85
      %s87 = sphi 0, %s85
      %s88 = sphi 0, %s87
      %s102 = sphi 0, %s88
      %s106 = sphi 0, %s106
      %s108 = sphi 0, %s106
      %s109 = sphi 0, %s108
      %s123 = sphi 0, %s109
      %s127 = sphi 0, %s127
      %s129 = sphi 0, %s127
      %s130 = sphi 0, %s129
      %s144 = sphi 0, %s130
      %s152 = sphi 0, %s154
      %s155 = sphi 0, %s152
      %s156 = sphi 0, %s155
      %s172 = sphi 0, %s156
    $region4: #{tpu_custom_call.1} parent=1 // loop_header_branch
      %21 = sbr.rel (%p19) target = $region8
    $region5: #{tpu_custom_call.1} parent=1 // loop_body
      %s23 = ssub.s32 %s18, 1
      %s24 = ssub.s32 %s18, 2
      %s31 = sadd.s32 1, %s26
      %p32 = scmp.ge.s32.totalorder %s31, 1
      %s33 = scalar_select %p32, 0, %s31
      %s34 = sadd.s32 1, %s25
      %s35 = scalar_select %p32, %s34, %s25
      %p36 = scmp.ge.s32.totalorder %s35, 2
      %s37 = scalar_select %p36, 0, %s35
      %s38 = ssub.s32 %s25, %s37
      %p39 = scmp.eq.s32.totalorder %s38, 0
      %s41 = sadd.s32 %s40, 1
      %s42 = scalar_select %p39, %s40, %s41
      %p45 = pneg %p39
      %p46 = scmp.eq.s32.totalorder %s18, 1
      %p47 = por %p45, %p46
      %p48 = scmp.ne.s32.totalorder %s40, %s43
      %p49 = scmp.eq.s32.totalorder %s18, 0
      %p50 = por %p48, %p49
      %p51 = scmp.ne.s32.totalorder %s40, %s43
      %p52 = scmp.eq.s32.totalorder %s23, 1
      %p53 = por %p51, %p52
      %p54 = scmp.ne.s32.totalorder %s43, %s44
      %p55 = scmp.eq.s32.totalorder %s23, 0
      %p56 = por %p54, %p55
      %p57 = scmp.ne.s32.totalorder %s43, %s44
      %p58 = scmp.eq.s32.totalorder %s24, 1
      %p59 = por %p57, %p58
      %p61 = scmp.ne.s32.totalorder %s44, %s60
      %p62 = scmp.eq.s32.totalorder %s24, 0
      %p63 = por %p61, %p62
      %s65 = sadd.s32 %s64, 1
      %p68 = scmp.eq.s32.totalorder %s18, 1
      %p69 = scmp.ne.s32.totalorder %s64, %s66
      %p70 = scmp.eq.s32.totalorder %s18, 0
      %p71 = por %p69, %p70
      %p72 = scmp.ne.s32.totalorder %s64, %s66
      %p73 = scmp.eq.s32.totalorder %s23, 1
      %p74 = por %p72, %p73
      %p75 = scmp.ne.s32.totalorder %s66, %s67
      %p76 = scmp.eq.s32.totalorder %s23, 0
      %p77 = por %p75, %p76
      %p78 = scmp.ne.s32.totalorder %s66, %s67
      %p79 = scmp.eq.s32.totalorder %s24, 1
      %p80 = por %p78, %p79
      %p82 = scmp.ne.s32.totalorder %s67, %s81
      %p83 = scmp.eq.s32.totalorder %s24, 0
      %p84 = por %p82, %p83
      %s86 = sadd.s32 %s85, 1
      %p89 = scmp.eq.s32.totalorder %s18, 1
      %p90 = scmp.ne.s32.totalorder %s85, %s87
      %p91 = scmp.eq.s32.totalorder %s18, 0
      %p92 = por %p90, %p91
      %p93 = scmp.ne.s32.totalorder %s85, %s87
      %p94 = scmp.eq.s32.totalorder %s23, 1
      %p95 = por %p93, %p94
      %p96 = scmp.ne.s32.totalorder %s87, %s88
      %p97 = scmp.eq.s32.totalorder %s23, 0
      %p98 = por %p96, %p97
      %p99 = scmp.ne.s32.totalorder %s87, %s88
      %p100 = scmp.eq.s32.totalorder %s24, 1
      %p101 = por %p99, %p100
      %p103 = scmp.ne.s32.totalorder %s88, %s102
      %p104 = scmp.eq.s32.totalorder %s24, 0
      %p105 = por %p103, %p104
      %s107 = sadd.s32 %s106, 1
      %p110 = scmp.eq.s32.totalorder %s18, 1
      %p111 = scmp.ne.s32.totalorder %s106, %s108
      %p112 = scmp.eq.s32.totalorder %s18, 0
      %p113 = por %p111, %p112
      %p114 = scmp.ne.s32.totalorder %s106, %s108
      %p115 = scmp.eq.s32.totalorder %s23, 1
      %p116 = por %p114, %p115
      %p117 = scmp.ne.s32.totalorder %s108, %s109
      %p118 = scmp.eq.s32.totalorder %s23, 0
      %p119 = por %p117, %p118
      %p120 = scmp.ne.s32.totalorder %s108, %s109
      %p121 = scmp.eq.s32.totalorder %s24, 1
      %p122 = por %p120, %p121
      %p124 = scmp.ne.s32.totalorder %s109, %s123
      %p125 = scmp.eq.s32.totalorder %s24, 0
      %p126 = por %p124, %p125
      %s128 = sadd.s32 %s127, 1
      %p131 = scmp.eq.s32.totalorder %s18, 1
      %p132 = scmp.ne.s32.totalorder %s127, %s129
      %p133 = scmp.eq.s32.totalorder %s18, 0
      %p134 = por %p132, %p133
      %p135 = scmp.ne.s32.totalorder %s127, %s129
      %p136 = scmp.eq.s32.totalorder %s23, 1
      %p137 = por %p135, %p136
      %p138 = scmp.ne.s32.totalorder %s129, %s130
      %p139 = scmp.eq.s32.totalorder %s23, 0
      %p140 = por %p138, %p139
      %p141 = scmp.ne.s32.totalorder %s129, %s130
      %p142 = scmp.eq.s32.totalorder %s24, 1
      %p143 = por %p141, %p142
      %p145 = scmp.ne.s32.totalorder %s130, %s144
      %p146 = scmp.eq.s32.totalorder %s24, 0
      %p147 = por %p145, %p146
      %s148 = ssub.s32 %s25, %s37
      %s149 = ssub.s32 %s26, %s33
      %s150 = sor.u32 %s148, %s149
      %p151 = scmp.eq.s32.totalorder %s150, 0
      %s153 = sadd.s32 %s152, 1
      %s154 = scalar_select %p151, %s152, %s153
      %p157 = pneg %p151
      %p158 = scmp.eq.s32.totalorder %s18, 1
      %p159 = por %p157, %p158
      %p160 = scmp.ne.s32.totalorder %s152, %s155
      %p161 = scmp.eq.s32.totalorder %s18, 0
      %p162 = por %p160, %p161
      %p163 = scmp.ne.s32.totalorder %s152, %s155
      %p164 = scmp.eq.s32.totalorder %s23, 1
      %p165 = por %p163, %p164
      %p166 = scmp.ne.s32.totalorder %s155, %s156
      %p167 = scmp.eq.s32.totalorder %s23, 0
      %p168 = por %p166, %p167
      %p169 = scmp.ne.s32.totalorder %s155, %s156
      %p170 = scmp.eq.s32.totalorder %s24, 1
      %p171 = por %p169, %p170
      %p173 = scmp.ne.s32.totalorder %s156, %s172
      %p174 = scmp.eq.s32.totalorder %s24, 0
      %p175 = por %p173, %p174
      %p176 = scmp.le.s32.totalorder 1, %s18
      %p177 = scmp.lt.s32.totalorder %s18, 3
      %p178 = pnand %p176, %p177
      %p179 = pneg %p178
      // Predicated region
      $region9: #{tpu_custom_call.1} parent=5 // pred_check
        _
      $region10: #{tpu_custom_call.1} parent=5 // pred_check_branch
        %181 = sbr.rel (%p178) target = $region12
      $region11: #{tpu_custom_call.1} parent=5 // pred_region
        %s182 = ssub.s32 %s18, 1
        // Predicated region
        $region13: #{tpu_custom_call.1} parent=11 // pred_check
          %p183 = pneg %p77
        $region14: #{tpu_custom_call.1} parent=11 // pred_check_branch
          %185 = sbr.rel (%p183) target = $region16
        $region15: #{tpu_custom_call.1} parent=11 // pred_region
          %s187 = ssub.s32 3072, 3072
          %188 = vsyncadd [#allocation9], %s187
          %s189 = sshll.u32 [#allocation8], 4
          %s190 = int_to_ptr.vmem [resolvable:$true] %s189
          %195 = dma.hbm_to_vmem [thread:$0]  %s1, 3072, %s190, [#allocation9], 192, 192, 12
        $region16: #{tpu_custom_call.1} parent=11 // pred_fallthru
          _
        // Predicated region
        $region17: #{tpu_custom_call.1} parent=11 // pred_check
          %p196 = pneg %p98
        $region18: #{tpu_custom_call.1} parent=11 // pred_check_branch
          %198 = sbr.rel (%p196) target = $region20
        $region19: #{tpu_custom_call.1} parent=11 // pred_region
          _
        $region20: #{tpu_custom_call.1} parent=11 // pred_fallthru
          _
        // Predicated region
        $region21: #{tpu_custom_call.1} parent=11 // pred_check
          %p199 = pneg %p119
        $region22: #{tpu_custom_call.1} parent=11 // pred_check_branch
          %201 = sbr.rel (%p199) target = $region24
        $region23: #{tpu_custom_call.1} parent=11 // pred_region
          %s203 = ssub.s32 1024, 1024
          %204 = vsyncadd [#allocation9], %s203
          %s205 = sshll.u32 [#allocation10], 4
          %s206 = int_to_ptr.vmem [resolvable:$true] %s205
          %211 = dma.hbm_to_vmem [thread:$0]  %s3, 1024, %s206, [#allocation9], 64, 64, 4
        $region24: #{tpu_custom_call.1} parent=11 // pred_fallthru
          _
        // Predicated region
        $region25: #{tpu_custom_call.1} parent=11 // pred_check
          %p212 = pneg %p140
        $region26: #{tpu_custom_call.1} parent=11 // pred_check_branch
          %214 = sbr.rel (%p212) target = $region28
        $region27: #{tpu_custom_call.1} parent=11 // pred_region
          _
        $region28: #{tpu_custom_call.1} parent=11 // pred_fallthru
          _
      $region12: #{tpu_custom_call.1} parent=5 // pred_fallthru
        _
      %p215 = scmp.lt.s32.totalorder %s18, 2
      // Predicated region
      $region29: #{tpu_custom_call.1} parent=5 // pred_check
        %p216 = pneg %p215
      $region30: #{tpu_custom_call.1} parent=5 // pred_check_branch
        %218 = sbr.rel (%p216) target = $region32
      $region31: #{tpu_custom_call.1} parent=5 // pred_region
        // Predicated region
        $region33: #{tpu_custom_call.1} parent=31 // pred_check
          %p219 = pneg %p50
        $region34: #{tpu_custom_call.1} parent=31 // pred_check_branch
          %221 = sbr.rel (%p219) target = $region36
        $region35: #{tpu_custom_call.1} parent=31 // pred_region
          %s222 = sand.u32 %s40, 1
          %s223 = scalar_lea.sflag [#allocation6], %s222
          %s224 = sand.u32 %s40, 1
          %s225 = smul.addr %s224, 8
          %s226 = scalar_lea.vmem [#allocation5], %s225
          %s228 = ssub.s32 128, 128
          %229 = vsyncadd %s223, %s228
          %s230 = smul.addr %s25, 2
          %s231 = smul.addr %s230, 64
          %s232 = scalar_lea.hbm %s0, %s231
          %s233 = sshll.u32 %s226, 4
          %s234 = int_to_ptr.vmem [resolvable:$true] %s233
          %239 = dma.hbm_to_vmem [thread:$0]  %s232, 128, %s234, %s223, 64, 64, 4
        $region36: #{tpu_custom_call.1} parent=31 // pred_fallthru
          _
      $region32: #{tpu_custom_call.1} parent=5 // pred_fallthru
        _
      %p240 = scmp.le.s32.totalorder 1, %s18
      %p241 = scmp.lt.s32.totalorder %s18, 3
      %p242 = pnand %p240, %p241
      %p243 = pneg %p242
      // Predicated region
      $region37: #{tpu_custom_call.1} parent=5 // pred_check
        _
      $region38: #{tpu_custom_call.1} parent=5 // pred_check_branch
        %245 = sbr.rel (%p242) target = $region40
      $region39: #{tpu_custom_call.1} parent=5 // pred_region
        %s246 = ssub.s32 %s18, 1
        %s247 = sand.u32 %s43, 1
        %s248 = scalar_lea.sflag [#allocation6], %s247
        %s249 = sand.u32 %s43, 1
        %s250 = smul.addr %s249, 8
        %s251 = scalar_lea.vmem [#allocation5], %s250
        // Predicated region
        $region41: #{tpu_custom_call.1} parent=39 // pred_check
          %p252 = pneg %p56
        $region42: #{tpu_custom_call.1} parent=39 // pred_check_branch
          %254 = sbr.rel (%p252) target = $region44
        $region43: #{tpu_custom_call.1} parent=39 // pred_region
          %255 = dma.done %s248, 128
        $region44: #{tpu_custom_call.1} parent=39 // pred_fallthru
          _
        // Predicated region
        $region45: #{tpu_custom_call.1} parent=39 // pred_check
          %p256 = pneg %p77
        $region46: #{tpu_custom_call.1} parent=39 // pred_check_branch
          %258 = sbr.rel (%p256) target = $region48
        $region47: #{tpu_custom_call.1} parent=39 // pred_region
          %259 = dma.done [#allocation9], 3072
        $region48: #{tpu_custom_call.1} parent=39 // pred_fallthru
          _
        // Predicated region
        $region49: #{tpu_custom_call.1} parent=39 // pred_check
          %p260 = pneg %p119
        $region50: #{tpu_custom_call.1} parent=39 // pred_check_branch
          %262 = sbr.rel (%p260) target = $region52
        $region51: #{tpu_custom_call.1} parent=39 // pred_region
          %263 = dma.done [#allocation9], 1024
        $region52: #{tpu_custom_call.1} parent=39 // pred_fallthru
          _
        %s264 = sand.u32 %s43, 1
        %s265 = scalar_lea.sflag [#allocation6], %s264
        %s266 = sand.u32 %s43, 1
        %s267 = smul.addr %s266, 8
        %s268 = scalar_lea.vmem [#allocation5], %s267
        %p269 = pneg %p56
        %p270 = pneg %p53
        %p271 = pneg %p77
        %p272 = pneg %p74
        %p273 = pneg %p98
        %p274 = pneg %p95
        %p275 = pneg %p119
        %p276 = pneg %p116
        %p277 = pneg %p140
        %p278 = pneg %p137
        %p279 = pneg %p168
        %p280 = pneg %p165
        %s281 = sand.u32 %s155, 1
        %s282 = scalar_lea.sflag [#allocation7], %s281
        %s283 = sand.u32 %s155, 1
        %s284 = smul.addr %s283, 8
        %s285 = scalar_lea.vmem [#allocation11], %s284
        %s286 = smul.u32 2, %s28
        %p288 = scmp.eq.s32.totalorder %s28, 0
        // Predicated region
        $region53: #{tpu_custom_call.1} parent=39 // pred_check
          %p289 = pneg %p288
        $region54: #{tpu_custom_call.1} parent=39 // pred_check_branch
          %291 = sbr.rel (%p289) target = $region56
        $region55: #{tpu_custom_call.1} parent=39 // pred_region
          %v292 = vld [vmem:[%s251] sm:$0xf]
          %v293 = vld [vmem:[%s251 + $0x4] sm:$0xf]
          %v294 = vld [vmem:[#allocation8] sm:$0xff]
          %v295 = vld [vmem:[#allocation8 + $0x8] sm:$0xf]
          %v296 = vld [vmem:[#allocation8 + $0xc] sm:$0xff]
          %v297 = vld [vmem:[#allocation8 + $0x14] sm:$0xf]
          %v298 = vld [vmem:[#allocation8 + $0x18] sm:$0xff]
          %v299 = vld [vmem:[#allocation8 + $0x20] sm:$0xf]
          %v300 = vld [vmem:[#allocation8 + $0x24] sm:$0xff]
          %v301 = vld [vmem:[#allocation8 + $0x2c] sm:$0xf]
          %v302 = vld [vmem:[#allocation8 + $0x30] sm:$0xff]
          %v303 = vld [vmem:[#allocation8 + $0x38] sm:$0xf]
          %v304 = vld [vmem:[#allocation8 + $0x3c] sm:$0xff]
          %v305 = vld [vmem:[#allocation8 + $0x44] sm:$0xf]
          %v306 = vld [vmem:[#allocation8 + $0x48] sm:$0xff]
          %v307 = vld [vmem:[#allocation8 + $0x50] sm:$0xf]
          %v308 = vld [vmem:[#allocation8 + $0x54] sm:$0xff]
          %v309 = vld [vmem:[#allocation8 + $0x5c] sm:$0xf]
          %v310 = vld [vmem:[#allocation8 + $0x60] sm:$0xff]
          %v311 = vld [vmem:[#allocation8 + $0x68] sm:$0xf]
          %v312 = vld [vmem:[#allocation8 + $0x6c] sm:$0xff]
          %v313 = vld [vmem:[#allocation8 + $0x74] sm:$0xf]
          %v314 = vld [vmem:[#allocation8 + $0x78] sm:$0xff]
          %v315 = vld [vmem:[#allocation8 + $0x80] sm:$0xf]
          %v316 = vld [vmem:[#allocation8 + $0x84] sm:$0xff]
          %v317 = vld [vmem:[#allocation8 + $0x8c] sm:$0xf]
          %v318 = vld [vmem:[#allocation8 + $0x90] sm:$0xff]
          %v319 = vld [vmem:[#allocation8 + $0x98] sm:$0xf]
          %v320 = vld [vmem:[#allocation8 + $0x9c] sm:$0xff]
          %v321 = vld [vmem:[#allocation8 + $0xa4] sm:$0xf]
          %v322 = vld [vmem:[#allocation8 + $0xa8] sm:$0xff]
          %v323 = vld [vmem:[#allocation8 + $0xb0] sm:$0xf]
          %v324 = vld [vmem:[#allocation8 + $0xb4] sm:$0xff]
          %v325 = vld [vmem:[#allocation8 + $0xbc] sm:$0xf]
          %v326 = vld [vmem:[%s2] sm:$0x7]
          %v328 = vlaneseq
          %v329 = vshrl.u32 %v328, 7
          %v330 = vsub.s32 0, %v329
          %v331 = vrot.slane %v326, %v330
          %v332 = vlaneseq
          %v333 = vshrl.u32 %v332, 7
          %v334 = vsub.s32 1, %v333
          %v335 = vrot.slane %v326, %v334
          %v336 = vlaneseq
          %v337 = vshrl.u32 %v336, 7
          %v338 = vsub.s32 2, %v337
          %v339 = vrot.slane %v326, %v338
          %v345 = vunpack.c.l.b16 %v292
          %v346 = vunpack.c.l.b16 %v293
          %v347 = vpack.c.b16 %v346, %v345
          %v381 = vunpack.c.l.b16 %v294
          %v382 = vunpack.c.h.b16 %v294
          %v383 = vunpack.c.l.b16 %v295
          %v384 = vunpack.c.l.b16 %v296
          %v385 = vunpack.c.h.b16 %v296
          %v386 = vunpack.c.l.b16 %v297
          %v387 = vunpack.c.l.b16 %v298
          %v388 = vunpack.c.h.b16 %v298
          %v389 = vunpack.c.l.b16 %v299
          %v390 = vunpack.c.l.b16 %v300
          %v391 = vunpack.c.h.b16 %v300
          %v392 = vunpack.c.l.b16 %v301
          %v393 = vunpack.c.l.b16 %v302
          %v394 = vunpack.c.h.b16 %v302
          %v395 = vunpack.c.l.b16 %v303
          %v396 = vunpack.c.l.b16 %v304
          %v397 = vunpack.c.h.b16 %v304
          %v398 = vunpack.c.l.b16 %v305
          %v399 = vunpack.c.l.b16 %v306
          %v400 = vunpack.c.h.b16 %v306
          %v401 = vunpack.c.l.b16 %v307
          %v402 = vunpack.c.l.b16 %v308
          %v403 = vunpack.c.h.b16 %v308
          %v404 = vunpack.c.l.b16 %v309
          %v405 = vunpack.c.l.b16 %v310
          %v406 = vunpack.c.h.b16 %v310
          %v407 = vunpack.c.l.b16 %v311
          %v408 = vunpack.c.l.b16 %v312
          %v409 = vunpack.c.h.b16 %v312
          %v410 = vunpack.c.l.b16 %v313
          %v411 = vunpack.c.l.b16 %v314
          %v412 = vunpack.c.h.b16 %v314
          %v413 = vunpack.c.l.b16 %v315
          %v414 = vunpack.c.l.b16 %v316
          %v415 = vunpack.c.h.b16 %v316
          %v416 = vunpack.c.l.b16 %v317
          %v417 = vunpack.c.l.b16 %v318
          %v418 = vunpack.c.h.b16 %v318
          %v419 = vunpack.c.l.b16 %v319
          %v420 = vunpack.c.l.b16 %v320
          %v421 = vunpack.c.h.b16 %v320
          %v422 = vunpack.c.l.b16 %v321
          %v423 = vunpack.c.l.b16 %v322
          %v424 = vunpack.c.h.b16 %v322
          %v425 = vunpack.c.l.b16 %v323
          %v426 = vunpack.c.l.b16 %v324
          %v427 = vunpack.c.h.b16 %v324
          %v428 = vunpack.c.l.b16 %v325
          %v429 = vpack.c.b16 %v384, %v381
          %v430 = vpack.c.b16 %v385, %v382
          %v431 = vpack.c.b16 %v386, %v383
          %v432 = vpack.c.b16 %v390, %v387
          %v433 = vpack.c.b16 %v391, %v388
          %v434 = vpack.c.b16 %v392, %v389
          %v435 = vpack.c.b16 %v396, %v393
          %v436 = vpack.c.b16 %v397, %v394
          %v437 = vpack.c.b16 %v398, %v395
          %v438 = vpack.c.b16 %v402, %v399
          %v439 = vpack.c.b16 %v403, %v400
          %v440 = vpack.c.b16 %v404, %v401
          %v441 = vpack.c.b16 %v408, %v405
          %v442 = vpack.c.b16 %v409, %v406
          %v443 = vpack.c.b16 %v410, %v407
          %v444 = vpack.c.b16 %v414, %v411
          %v445 = vpack.c.b16 %v415, %v412
          %v446 = vpack.c.b16 %v416, %v413
          %v447 = vpack.c.b16 %v420, %v417
          %v448 = vpack.c.b16 %v421, %v418
          %v449 = vpack.c.b16 %v422, %v419
          %v450 = vpack.c.b16 %v426, %v423
          %v451 = vpack.c.b16 %v427, %v424
          %v452 = vpack.c.b16 %v428, %v425
          %477 = vmatprep.subr.bf16.mxu0 %v430
          %478 = vmatpush1.bf16.msra.mxu0 %v429
          %479 = vmatprep.subr.bf16.mxu0 %v433
          %480 = vmatpush1.bf16.msra.mxu0 %v432
          %481 = vmatprep.subr.bf16.mxu0 %v436
          %482 = vmatpush1.bf16.msra.mxu0 %v435
          %483 = vmatprep.subr.bf16.mxu0 %v439
          %484 = vmatpush1.bf16.msra.mxu0 %v438
          %485 = vmatprep.subr.bf16.mxu0 %v442
          %486 = vmatpush1.bf16.msra.mxu0 %v441
          %487 = vmatprep.subr.bf16.mxu0 %v445
          %488 = vmatpush1.bf16.msra.mxu0 %v444
          %489 = vmatprep.subr.bf16.mxu0 %v448
          %490 = vmatpush1.bf16.msra.mxu0 %v447
          %491 = vmatprep.subr.bf16.mxu0 %v451
          %492 = vmatpush1.bf16.msra.mxu0 %v450
          %493 = vmatprep.subr.bf16.mxu0 0
          %494 = vmatpush1.bf16.msra.mxu0 0
          %495 = vmatprep.subr.bf16.mxu0 0
          %496 = vmatpush1.bf16.msra.mxu0 0
          %497 = vmatprep.subr.bf16.mxu0 0
          %498 = vmatpush1.bf16.msra.mxu0 0
          %499 = vmatprep.subr.bf16.mxu0 0
          %500 = vmatpush1.bf16.msra.mxu0 0
          %501 = vmatprep.subr.bf16.mxu0 0
          %502 = vmatpush1.bf16.msra.mxu0 0
          %503 = vmatprep.subr.bf16.mxu0 0
          %504 = vmatpush1.bf16.msra.mxu0 0
          %505 = vmatprep.subr.bf16.mxu0 0
          %506 = vmatpush1.bf16.msra.mxu0 0
          %507 = vmatprep.subr.bf16.mxu0 0
          %508 = vmatpush1.bf16.msra.mxu0 0
          %509 = vmatprep.mubr.bf16.mxu0 0
          %510 = vmatmul.mubr.bf16.gmra.mrb[0].mxu0 %v347
          %v511 = vpop.f32.mrb[0].mxu0
          %v512 = vadd.f32 %v331, %v511
          %v513 = vpop.f32.mrb[0].mxu0
          %v514 = vadd.f32 %v335, %v513
          %v515 = vpop.f32.mrb[0].mxu0
          %v516 = vadd.f32 %v331, %v515
          %v517 = vpop.f32.mrb[0].mxu0
          %v518 = vadd.f32 %v335, %v517
          %519 = vdwg.mxu0
          %520 = vmatprep.subr.bf16.mxu0 0
          %521 = vmatpush1.bf16.msra.mxu0 %v431
          %522 = vmatprep.subr.bf16.mxu0 0
          %523 = vmatpush1.bf16.msra.mxu0 %v434
          %524 = vmatprep.subr.bf16.mxu0 0
          %525 = vmatpush1.bf16.msra.mxu0 %v437
          %526 = vmatprep.subr.bf16.mxu0 0
          %527 = vmatpush1.bf16.msra.mxu0 %v440
          %528 = vmatprep.subr.bf16.mxu0 0
          %529 = vmatpush1.bf16.msra.mxu0 %v443
          %530 = vmatprep.subr.bf16.mxu0 0
          %531 = vmatpush1.bf16.msra.mxu0 %v446
          %532 = vmatprep.subr.bf16.mxu0 0
          %533 = vmatpush1.bf16.msra.mxu0 %v449
          %534 = vmatprep.subr.bf16.mxu0 0
          %535 = vmatpush1.bf16.msra.mxu0 %v452
          %536 = vmatprep.subr.bf16.mxu0 0
          %537 = vmatpush1.bf16.msra.mxu0 0
          %538 = vmatprep.subr.bf16.mxu0 0
          %539 = vmatpush1.bf16.msra.mxu0 0
          %540 = vmatprep.subr.bf16.mxu0 0
          %541 = vmatpush1.bf16.msra.mxu0 0
          %542 = vmatprep.subr.bf16.mxu0 0
          %543 = vmatpush1.bf16.msra.mxu0 0
          %544 = vmatprep.subr.bf16.mxu0 0
          %545 = vmatpush1.bf16.msra.mxu0 0
          %546 = vmatprep.subr.bf16.mxu0 0
          %547 = vmatpush1.bf16.msra.mxu0 0
          %548 = vmatprep.subr.bf16.mxu0 0
          %549 = vmatpush1.bf16.msra.mxu0 0
          %550 = vmatprep.subr.bf16.mxu0 0
          %551 = vmatpush1.bf16.msra.mxu0 0
          %552 = vmatprep.mubr.bf16.mxu0 0
          %553 = vmatmul.mubr.bf16.gmra.mrb[0].mxu0 %v347
          %v554 = vpop.f32.mrb[0].mxu0
          %v555 = vadd.f32 %v339, %v554
          %v556 = vpop.f32.mrb[0].mxu0
          %v557 = vpop.f32.mrb[0].mxu0
          %v558 = vadd.f32 %v339, %v557
          %v559 = vpop.f32.mrb[0].mxu0
          %560 = vdwg.mxu0
          %v561 = vpack.c.bf16 %v516, %v512
          %v562 = vpack.c.bf16 %v518, %v514
          %v563 = vpack.c.bf16 %v558, %v555
          %564 = vst [vmem:[#allocation2] sm:$0xff] %v561
          %565 = vst [vmem:[#allocation3] sm:$0xff] %v562
          %566 = vst [vmem:[#allocation4] sm:$0xff] %v563
        $region56: #{tpu_custom_call.1} parent=39 // pred_fallthru
          _
        %s567 = smul.u32 %s28, 16
        %s568 = sshra.s32 %s567, 4
        %s569 = sand.u32 %s567, 15
        %s570 = smul.addr %s568, 8
        %s571 = scalar_lea.vmem [#allocation2], %s570
        %v572 = vld [vmem:[%s571] sm:$0xff]
        %v573 = vld [vmem:[#allocation3] sm:$0xff]
        %v574 = vld [vmem:[#allocation4] sm:$0xff]
        %575 = vmatprep.subr.bf16.mxu0 0
        %576 = vmatpush1.bf16.xpose.msra.mxu0 %v573
        %577 = vmatprep.subr.bf16.mxu0 0
        %578 = vmatpush1.bf16.xpose.msra.mxu0 0
        %579 = vmatprep.subr.bf16.mxu0 0
        %580 = vmatpush1.bf16.xpose.msra.mxu0 0
        %581 = vmatprep.subr.bf16.mxu0 0
        %582 = vmatpush1.bf16.xpose.msra.mxu0 0
        %583 = vmatprep.subr.bf16.mxu0 0
        %584 = vmatpush1.bf16.xpose.msra.mxu0 0
        %585 = vmatprep.subr.bf16.mxu0 0
        %586 = vmatpush1.bf16.xpose.msra.mxu0 0
        %587 = vmatprep.subr.bf16.mxu0 0
        %588 = vmatpush1.bf16.xpose.msra.mxu0 0
        %589 = vmatprep.subr.bf16.mxu0 0
        %590 = vmatpush1.bf16.xpose.msra.mxu0 0
        %591 = vmatprep.subr.bf16.mxu0 0
        %592 = vmatpush1.bf16.xpose.msra.mxu0 0
        %593 = vmatprep.subr.bf16.mxu0 0
        %594 = vmatpush1.bf16.xpose.msra.mxu0 0
        %595 = vmatprep.subr.bf16.mxu0 0
        %596 = vmatpush1.bf16.xpose.msra.mxu0 0
        %597 = vmatprep.subr.bf16.mxu0 0
        %598 = vmatpush1.bf16.xpose.msra.mxu0 0
        %599 = vmatprep.subr.bf16.mxu0 0
        %600 = vmatpush1.bf16.xpose.msra.mxu0 0
        %601 = vmatprep.subr.bf16.mxu0 0
        %602 = vmatpush1.bf16.xpose.msra.mxu0 0
        %603 = vmatprep.subr.bf16.mxu0 0
        %604 = vmatpush1.bf16.xpose.msra.mxu0 0
        %605 = vmatprep.subr.bf16.mxu0 0
        %606 = vmatpush1.bf16.xpose.msra.mxu0 0
        %607 = vmatprep.mubr.bf16.mxu0 0
        %608 = vmatmul.mubr.bf16.gmra.mrb[0].mxu0 %v572
        %v609 = vpop.f32.mrb[0].mxu0
        %v610 = vadd.f32 0.0, %v609
        %v611 = vpop.f32.mrb[0].mxu0
        %v612 = vpop.f32.mrb[0].mxu0
        %v613 = vadd.f32 0.0, %v612
        %v614 = vpop.f32.mrb[0].mxu0
        %615 = vdwg.mxu0
        %vm616 = vcmask 130048
        %v617 = vsel %vm616, %v610, -inf
        %618 = vmax.xlane.f32.xlu0 %v617
        %v619 = vpop.xlane.xlu0 %618
        %v620 = vsel %vm616, %v613, -inf
        %621 = vmax.xlane.f32.xlu0 %v620
        %v622 = vpop.xlane.xlu0 %621
        %v623 = vsub.f32 %v610, %v619
        %v624 = vsub.f32 %v613, %v622
        %v625 = vmul.f32 %v623, 1.442695
        %v626 = vpow.pop %v625
        %v627 = vmul.f32 %v624, 1.442695
        %v628 = vpow.pop %v627
        %v629 = vsel %vm616, %v626, 0.0
        %630 = vadd.xlane.f32.xlu0 %v629
        %v631 = vpop.xlane.xlu0 %630
        %v632 = vsel %vm616, %v628, 0.0
        %633 = vadd.xlane.f32.xlu0 %v632
        %v634 = vpop.xlane.xlu0 %633
        %v635 = vpack.c.bf16 %v628, %v626
        %v637 = vsel %vm616, %v635, 0
        %639 = vmatprep.subr.bf16.mxu0 0
        %640 = vmatpush1.bf16.msra.mxu0 %v574
        %641 = vmatprep.subr.bf16.mxu0 0
        %642 = vmatpush1.bf16.msra.mxu0 0
        %643 = vmatprep.subr.bf16.mxu0 0
        %644 = vmatpush1.bf16.msra.mxu0 0
        %645 = vmatprep.subr.bf16.mxu0 0
        %646 = vmatpush1.bf16.msra.mxu0 0
        %647 = vmatprep.subr.bf16.mxu0 0
        %648 = vmatpush1.bf16.msra.mxu0 0
        %649 = vmatprep.subr.bf16.mxu0 0
        %650 = vmatpush1.bf16.msra.mxu0 0
        %651 = vmatprep.subr.bf16.mxu0 0
        %652 = vmatpush1.bf16.msra.mxu0 0
        %653 = vmatprep.subr.bf16.mxu0 0
        %654 = vmatpush1.bf16.msra.mxu0 0
        %655 = vmatprep.subr.bf16.mxu0 0
        %656 = vmatpush1.bf16.msra.mxu0 0
        %657 = vmatprep.subr.bf16.mxu0 0
        %658 = vmatpush1.bf16.msra.mxu0 0
        %659 = vmatprep.subr.bf16.mxu0 0
        %660 = vmatpush1.bf16.msra.mxu0 0
        %661 = vmatprep.subr.bf16.mxu0 0
        %662 = vmatpush1.bf16.msra.mxu0 0
        %663 = vmatprep.subr.bf16.mxu0 0
        %664 = vmatpush1.bf16.msra.mxu0 0
        %665 = vmatprep.subr.bf16.mxu0 0
        %666 = vmatpush1.bf16.msra.mxu0 0
        %667 = vmatprep.subr.bf16.mxu0 0
        %668 = vmatpush1.bf16.msra.mxu0 0
        %669 = vmatprep.subr.bf16.mxu0 0
        %670 = vmatpush1.bf16.msra.mxu0 0
        %671 = vmatprep.mubr.bf16.mxu0 0
        %672 = vmatmul.mubr.bf16.gmra.mrb[0].mxu0 %v637
        %v673 = vpop.f32.mrb[0].mxu0
        %v674 = vadd.f32 0.0, %v673
        %v675 = vpop.f32.mrb[0].mxu0
        %v676 = vpop.f32.mrb[0].mxu0
        %v677 = vadd.f32 0.0, %v676
        %v678 = vpop.f32.mrb[0].mxu0
        %679 = vdwg.mxu0
        %v680 = vrcp.pop %v631
        %v681 = vrcp.pop %v634
        %v682 = vmul.f32 %v674, %v680
        %v683 = vmul.f32 %v677, %v681
        %v684 = vpack.c.bf16 %v683, %v682
        %v685 = vld [vmem:[#allocation10] sm:$0xf]
        %v686 = vld [vmem:[#allocation10 + $0x4] sm:$0xf]
        %v687 = vld [vmem:[#allocation10 + $0x8] sm:$0xf]
        %v688 = vld [vmem:[#allocation10 + $0xc] sm:$0xf]
        %v689 = vld [vmem:[#allocation10 + $0x10] sm:$0xf]
        %v690 = vld [vmem:[#allocation10 + $0x14] sm:$0xf]
        %v691 = vld [vmem:[#allocation10 + $0x18] sm:$0xf]
        %v692 = vld [vmem:[#allocation10 + $0x1c] sm:$0xf]
        %v693 = vld [vmem:[#allocation10 + $0x20] sm:$0xf]
        %v694 = vld [vmem:[#allocation10 + $0x24] sm:$0xf]
        %v695 = vld [vmem:[#allocation10 + $0x28] sm:$0xf]
        %v696 = vld [vmem:[#allocation10 + $0x2c] sm:$0xf]
        %v697 = vld [vmem:[#allocation10 + $0x30] sm:$0xf]
        %v698 = vld [vmem:[#allocation10 + $0x34] sm:$0xf]
        %v699 = vld [vmem:[#allocation10 + $0x38] sm:$0xf]
        %v700 = vld [vmem:[#allocation10 + $0x3c] sm:$0xf]
        %v701 = vld [vmem:[%s4] sm:$0x1]
        %v703 = vlaneseq
        %v704 = vshrl.u32 %v703, 7
        %v705 = vsub.s32 0, %v704
        %v706 = vrot.slane %v701, %v705
        %v724 = vunpack.c.l.b16 %v685
        %v725 = vunpack.c.l.b16 %v686
        %v726 = vunpack.c.l.b16 %v687
        %v727 = vunpack.c.l.b16 %v688
        %v728 = vunpack.c.l.b16 %v689
        %v729 = vunpack.c.l.b16 %v690
        %v730 = vunpack.c.l.b16 %v691
        %v731 = vunpack.c.l.b16 %v692
        %v732 = vunpack.c.l.b16 %v693
        %v733 = vunpack.c.l.b16 %v694
        %v734 = vunpack.c.l.b16 %v695
        %v735 = vunpack.c.l.b16 %v696
        %v736 = vunpack.c.l.b16 %v697
        %v737 = vunpack.c.l.b16 %v698
        %v738 = vunpack.c.l.b16 %v699
        %v739 = vunpack.c.l.b16 %v700
        %v740 = vpack.c.b16 %v725, %v724
        %v741 = vpack.c.b16 %v727, %v726
        %v742 = vpack.c.b16 %v729, %v728
        %v743 = vpack.c.b16 %v731, %v730
        %v744 = vpack.c.b16 %v733, %v732
        %v745 = vpack.c.b16 %v735, %v734
        %v746 = vpack.c.b16 %v737, %v736
        %v747 = vpack.c.b16 %v739, %v738
        %756 = vmatprep.subr.bf16.mxu0 0
        %757 = vmatpush1.bf16.msra.mxu0 %v740
        %758 = vmatprep.subr.bf16.mxu0 0
        %759 = vmatpush1.bf16.msra.mxu0 %v741
        %760 = vmatprep.subr.bf16.mxu0 0
        %761 = vmatpush1.bf16.msra.mxu0 %v742
        %762 = vmatprep.subr.bf16.mxu0 0
        %763 = vmatpush1.bf16.msra.mxu0 %v743
        %764 = vmatprep.subr.bf16.mxu0 0
        %765 = vmatpush1.bf16.msra.mxu0 %v744
        %766 = vmatprep.subr.bf16.mxu0 0
        %767 = vmatpush1.bf16.msra.mxu0 %v745
        %768 = vmatprep.subr.bf16.mxu0 0
        %769 = vmatpush1.bf16.msra.mxu0 %v746
        %770 = vmatprep.subr.bf16.mxu0 0
        %771 = vmatpush1.bf16.msra.mxu0 %v747
        %772 = vmatprep.subr.bf16.mxu0 0
        %773 = vmatpush1.bf16.msra.mxu0 0
        %774 = vmatprep.subr.bf16.mxu0 0
        %775 = vmatpush1.bf16.msra.mxu0 0
        %776 = vmatprep.subr.bf16.mxu0 0
        %777 = vmatpush1.bf16.msra.mxu0 0
        %778 = vmatprep.subr.bf16.mxu0 0
        %779 = vmatpush1.bf16.msra.mxu0 0
        %780 = vmatprep.subr.bf16.mxu0 0
        %781 = vmatpush1.bf16.msra.mxu0 0
        %782 = vmatprep.subr.bf16.mxu0 0
        %783 = vmatpush1.bf16.msra.mxu0 0
        %784 = vmatprep.subr.bf16.mxu0 0
        %785 = vmatpush1.bf16.msra.mxu0 0
        %786 = vmatprep.subr.bf16.mxu0 0
        %787 = vmatpush1.bf16.msra.mxu0 0
        %788 = vmatprep.mubr.bf16.mxu0 0
        %789 = vmatmul.mubr.bf16.gmra.mrb[0].mxu0 %v684
        %v790 = vpop.f32.mrb[0].mxu0
        %v791 = vadd.f32 %v706, %v790
        %v792 = vpop.f32.mrb[0].mxu0
        %v793 = vpop.f32.mrb[0].mxu0
        %v794 = vadd.f32 %v706, %v793
        %v795 = vpop.f32.mrb[0].mxu0
        %796 = vdwg.mxu0
        %s797 = sshra.s32 %s567, 3
        %s798 = sand.u32 %s567, 7
        %s799 = smul.addr %s797, 4
        %s800 = scalar_lea.vmem %s251, %s799 [#allocation5]
        %v801 = vld [vmem:[%s800] sm:$0xf]
        %v802 = vld [vmem:[%s800 + $0x4] sm:$0xf]
        %v803 = vunpack.c.l.bf16 %v801
        %v804 = vunpack.c.l.bf16 %v802
        %v805 = vadd.f32 %v791, %v803
        %v806 = vadd.f32 %v794, %v804
        %v807 = vpack.c.bf16 %v806, %v805
        %v809 = vunpack.c.l.b16 %v807
        %v810 = vunpack.c.h.b16 %v807
        %v811 = vpack.c.b16 %v809, %v809
        %v812 = vpack.c.b16 %v810, %v810
        %815 = vst [vmem:[%s285] sm:$0xf] %v811
        %816 = vst [vmem:[%s285 + $0x4] sm:$0xf] %v812
        %s817 = sand.u32 %s155, 1
        %s818 = scalar_lea.sflag [#allocation7], %s817
        %s819 = sand.u32 %s155, 1
        %s820 = smul.addr %s819, 8
        %s821 = scalar_lea.vmem [#allocation11], %s820
        // Predicated region
        $region57: #{tpu_custom_call.1} parent=39 // pred_check
          %p822 = pneg %p165
        $region58: #{tpu_custom_call.1} parent=39 // pred_check_branch
          %824 = sbr.rel (%p822) target = $region60
        $region59: #{tpu_custom_call.1} parent=39 // pred_region
          %s825 = smul.u32 2, %s28
          %s827 = ssub.s32 128, 128
          %828 = vsyncadd %s818, %s827
          %s829 = smul.addr %s27, 2
          %s830 = sadd.s32 %s825, %s829
          %s831 = smul.addr %s830, 64
          %s832 = scalar_lea.hbm %s5, %s831
          %s833 = sshll.u32 %s821, 4
          %s834 = int_to_ptr.vmem [resolvable:$true] %s833
          %839 = dma.vmem_to_hbm [thread:$0]  %s834, 128, %s832, %s818, 64, 64, 4
        $region60: #{tpu_custom_call.1} parent=39 // pred_fallthru
          _
      $region40: #{tpu_custom_call.1} parent=5 // pred_fallthru
        _
      %p840 = scmp.le.s32.totalorder 2, %s18
      // Predicated region
      $region61: #{tpu_custom_call.1} parent=5 // pred_check
        %p841 = pneg %p840
      $region62: #{tpu_custom_call.1} parent=5 // pred_check_branch
        %843 = sbr.rel (%p841) target = $region64
      $region63: #{tpu_custom_call.1} parent=5 // pred_region
        %s844 = ssub.s32 %s18, 2
        // Predicated region
        $region65: #{tpu_custom_call.1} parent=63 // pred_check
          %p845 = pneg %p171
        $region66: #{tpu_custom_call.1} parent=63 // pred_check_branch
          %847 = sbr.rel (%p845) target = $region68
        $region67: #{tpu_custom_call.1} parent=63 // pred_region
          %s848 = sand.u32 %s156, 1
          %s849 = scalar_lea.sflag [#allocation7], %s848
          %s850 = sand.u32 %s156, 1
          %s851 = smul.addr %s850, 8
          %s852 = scalar_lea.vmem [#allocation11], %s851
          %853 = dma.done %s849, 128
        $region68: #{tpu_custom_call.1} parent=63 // pred_fallthru
          _
      $region64: #{tpu_custom_call.1} parent=5 // pred_fallthru
        _
    $region6: #{tpu_custom_call.1} parent=1 // loop_footer
      %s22 = sadd.s32 1, %s18
    $region7: #{tpu_custom_call.1} parent=1 // loop_footer_branch
      %17 = sbr.rel target = $region3
    $region8: #{tpu_custom_call.1} parent=1 // loop_exit
      _
    %854 = vsyncpa [#allocation6], 1
    %s855 = scalar_lea.sflag [#allocation6], 1
    %856 = vsyncpa %s855, 1
    %857 = vsyncpa [#allocation9], 1
    %858 = vsyncpa [#allocation7], 1
    %s859 = scalar_lea.sflag [#allocation7], 1
    %860 = vsyncpa %s859, 1

</llo_original>
